<compile_context>
chip_gen: v6e
topology: v6e:2x2x1
jax: 0.10.0
libtpu: 0.0.40
codegen_flags: <defaults>
</compile_context>

<pallas_src>
import functools

import jax
import jax.numpy as jnp
from jax.experimental import pallas as pl
from jax.experimental.pallas import tpu as pltpu

_LANE = 128  # lane width: every feature axis is padded to a multiple of this (once, offline)


def _round_up(x, m):
    return (x + m - 1) // m * m


_ACTIVATIONS = {
    "relu": lambda h: jnp.maximum(h, 0.0),
    "gelu": jax.nn.gelu,
    "tanh": jnp.tanh,
    "sigmoid": jax.nn.sigmoid,
    "identity": lambda h: h,
}


def _vmem_capacity_bytes():
    """Per-TensorCore VMEM capacity; conservative fallback = v7x (64 MiB/TC)."""
    try:
        return int(pltpu.get_tpu_info().vmem_capacity_bytes)
    except Exception:
        return 64 * 1024 * 1024


# --------------------------------------------------------------------------------------------
# Kernels
# --------------------------------------------------------------------------------------------
def _resident_kernel(x_ref, w1_ref, b1_ref, w2_ref, b2_ref, o_ref, *, activation):
    """out = act(x @ W1 + b1) @ W2 + b2, weights fully resident in VMEM, f32 accumulation."""
    xb = x_ref[...].astype(jnp.bfloat16)                      # cast in-kernel (no wrapper pass)
    h = jnp.dot(xb, w1_ref[...], preferred_element_type=jnp.float32) + b1_ref[...]
    h = _ACTIVATIONS[activation](h)
    out = jnp.dot(h.astype(jnp.bfloat16), w2_ref[...],
                  preferred_element_type=jnp.float32) + b2_ref[...]
    o_ref[...] = out.astype(o_ref.dtype)


def _streaming_kernel(x_ref, w1_ref, b1_ref, w2_ref, b2_ref, o_ref, acc_ref, *, activation):
    """Weight-streaming fallback: hidden dim tiled on an 'arbitrary' grid axis, f32 accumulator."""
    k = pl.program_id(1)

    @pl.when(k == 0)
    def _():
        acc_ref[...] = jnp.zeros_like(acc_ref)

    xb = x_ref[...].astype(jnp.bfloat16)
    h = jnp.dot(xb, w1_ref[...], preferred_element_type=jnp.float32) + b1_ref[...]
    h = _ACTIVATIONS[activation](h)
    acc_ref[...] += jnp.dot(h.astype(jnp.bfloat16), w2_ref[...],
                            preferred_element_type=jnp.float32)

    @pl.when(k == pl.num_programs(1) - 1)
    def _():
        o_ref[...] = (acc_ref[...] + b2_ref[...]).astype(o_ref.dtype)


# --------------------------------------------------------------------------------------------
# Block-size selection (VMEM-budget aware)
# --------------------------------------------------------------------------------------------
def _resident_tile_bytes(bb, in_f_p, hidden_p, latent_p, x_bytes, out_bytes):
    # x tiles (up to triple-buffered) + out tiles (double-buffered) + every live intermediate
    # the kernel actually materializes: bf16 x copy, f32 + bf16 hidden, pre-cast f32 output.
    return (3 * bb * in_f_p * x_bytes
            + 2 * bb * latent_p * out_bytes
            + bb * in_f_p * 2
            + bb * hidden_p * (4 + 2)
            + bb * latent_p * 4)


def _auto_block_b_resident(B, in_f_p, hidden_p, latent_p, x_bytes, out_bytes,
                           weight_bytes, budget):
    if B >= 8:
        cap = _round_up(B, 8)
        if B > 8:  # guarantee >=2 grid steps so both v7x TensorCores get work
            cap = min(cap, _round_up(pl.cdiv(B, 2), 8))
    else:
        cap = B
    for bb in (2048, 1024, 512, 256, 128, 64, 32, 16, 8):
        if bb > cap:
            continue
        tile = _resident_tile_bytes(bb, in_f_p, hidden_p, latent_p, x_bytes, out_bytes)
        if weight_bytes + tile <= budget:
            return bb, weight_bytes + tile
    bb = min(8, cap) if cap >= 1 else 1
    return bb, weight_bytes + _resident_tile_bytes(bb, in_f_p, hidden_p, latent_p,
                                                   x_bytes, out_bytes)


def _streaming_tile_bytes(bb, bh, in_f_p, hidden_p, latent_p, x_bytes, out_bytes):
    return (2 * in_f_p * bh * 2                 # W1 tile, double-buffered (bf16)
            + 2 * bh * latent_p * 2             # W2 tile, double-buffered (bf16)
            + 2 * bh * 4 + latent_p * 4         # b1 tiles + resident b2 (f32)
            + 2 * bb * in_f_p * x_bytes         # x tile
            + 2 * bb * latent_p * out_bytes     # out tile
            + bb * latent_p * 4                 # f32 accumulator scratch
            + bb * (in_f_p * 2 + bh * 6 + latent_p * 4))  # in-kernel intermediates


def _auto_blocks_streaming(B, in_f_p, hidden_p, latent_p, x_bytes, out_bytes, budget,
                           hidden_block=None, block_b=None):
    if block_b is not None:
        bb = max(1, int(block_b))
    elif B >= 8:
        bb = min(256, _round_up(B, 8))
        if B > 8:
            bb = min(bb, _round_up(pl.cdiv(B, 2), 8))
    else:
        bb = B
    if hidden_block is not None:
        bh = int(hidden_block)
        assert bh % _LANE == 0 and hidden_p % bh == 0, "hidden_block must divide padded hidden"
        return bb, bh, _streaming_tile_bytes(bb, bh, in_f_p, hidden_p, latent_p,
                                             x_bytes, out_bytes)
    for bh in (4096, 2048, 1024, 512, 256, 128):
        if bh > hidden_p or hidden_p % bh != 0:
            continue
        t = _streaming_tile_bytes(bb, bh, in_f_p, hidden_p, latent_p, x_bytes, out_bytes)
        if t <= budget:
            return bb, bh, t
    return bb, _LANE, _streaming_tile_bytes(bb, _LANE, in_f_p, hidden_p, latent_p,
                                            x_bytes, out_bytes)


# --------------------------------------------------------------------------------------------
# Public wrapper
# --------------------------------------------------------------------------------------------
def prepare_decoder_params(w1_t, b1, w2_t, b2):
    """One-time prep: pad feature dims to multiples of 128, cast weights to bf16, biases f32.

    w1_t: (in_f, hidden) == lin_encoder.weight.T; w2_t: (hidden, latent) == lin_out.weight.T.
    Call once and reuse — keeps per-call HBM traffic to just x, weights and the output.
    """
    in_f, hidden = w1_t.shape
    _, latent = w2_t.shape
    in_f_p, hidden_p, latent_p = (_round_up(d, _LANE) for d in (in_f, hidden, latent))
    w1p = jnp.pad(w1_t, ((0, in_f_p - in_f), (0, hidden_p - hidden))).astype(jnp.bfloat16)
    w2p = jnp.pad(w2_t, ((0, hidden_p - hidden), (0, latent_p - latent))).astype(jnp.bfloat16)
    b1p = jnp.pad(jnp.reshape(b1, (1, hidden)), ((0, 0), (0, hidden_p - hidden))).astype(jnp.float32)
    b2p = jnp.pad(jnp.reshape(b2, (1, latent)), ((0, 0), (0, latent_p - latent))).astype(jnp.float32)
    return w1p, b1p, w2p, b2p


@functools.partial(jax.jit,
                   static_argnames=("latent_dim", "activation", "block_b", "hidden_block",
                                    "out_dtype"))
def decoder_net(x, w1p, b1p, w2p, b2p, *, latent_dim, activation="relu",
                block_b=None, hidden_block=None, out_dtype=None):
    """Fused forward of DecoderNet: activation(x @ W1 + b1) @ W2 + b2.

    x: (B, in_features) f32/bf16.  w1p/b1p/w2p/b2p come from prepare_decoder_params().
    """
    assert activation in _ACTIVATIONS, f"unsupported activation: {activation}"
    B, in_f = x.shape
    in_f_p, hidden_p = w1p.shape
    _, latent_p = w2p.shape
    assert latent_dim <= latent_p
    out_dtype = jnp.dtype(out_dtype) if out_dtype is not None else x.dtype

    # Stream x directly when already lane-aligned (kernel casts to bf16); otherwise one fused
    # pad+cast pass (zero padding is exact through the matmuls).
    if in_f != in_f_p:
        x_in = jnp.pad(x, ((0, 0), (0, in_f_p - in_f))).astype(jnp.bfloat16)
    else:
        x_in = x
    x_bytes = jnp.dtype(x_in.dtype).itemsize
    out_bytes = jnp.dtype(out_dtype).itemsize

    # Generation-aware VMEM budgeting (64 MiB/TC on v7x, 128 MiB on v5e/v6e).
    cap = _vmem_capacity_bytes()
    budget = int(0.70 * cap)

    weight_bytes = (in_f_p * hidden_p + hidden_p * latent_p) * 2 + (hidden_p + latent_p) * 4
    use_streaming = (hidden_block is not None) or (weight_bytes > int(0.6 * budget))

    bh = None
    if not use_streaming:
        if block_b is None:
            bb, est = _auto_block_b_resident(B, in_f_p, hidden_p, latent_p,
                                             x_bytes, out_bytes, weight_bytes, budget)
        else:
            bb = max(1, int(block_b))
            est = weight_bytes + _resident_tile_bytes(bb, in_f_p, hidden_p, latent_p,
                                                      x_bytes, out_bytes)
    else:
        bb, bh, est = _auto_blocks_streaming(B, in_f_p, hidden_p, latent_p,
                                             x_bytes, out_bytes, budget,
                                             hidden_block=hidden_block, block_b=block_b)

    vmem_limit = int(min(0.85 * cap, max(2 * est, 32 * 1024 * 1024)))
    cost = pl.CostEstimate(
        flops=2 * B * (in_f_p * hidden_p + hidden_p * latent_p),
        transcendentals=0,
        bytes_accessed=(x_in.size * x_bytes + w1p.size * 2 + w2p.size * 2
                        + b1p.size * 4 + b2p.size * 4 + B * latent_p * out_bytes),
    )
    resident = pl.Buffered(1)  # constant index_map -> single VMEM copy (no double-buffering)

    if not use_streaming:
        grid_b = pl.cdiv(B, bb)
        if grid_b >= 4:  # deeper buffering on the only streamed operand hides DMA jitter
            x_spec = pl.BlockSpec((bb, in_f_p), lambda i: (i, 0), pipeline_mode=pl.Buffered(3))
        else:
            x_spec = pl.BlockSpec((bb, in_f_p), lambda i: (i, 0))
        out_p = pl.pallas_call(
            functools.partial(_resident_kernel, activation=activation),
            out_shape=jax.ShapeDtypeStruct((B, latent_p), out_dtype),
            grid_spec=pltpu.PrefetchScalarGridSpec(
                num_scalar_prefetch=0,
                grid=(grid_b,),
                in_specs=[
                    x_spec,                                                                     # x
                    pl.BlockSpec((in_f_p, hidden_p), lambda i: (0, 0), pipeline_mode=resident),  # W1
                    pl.BlockSpec((1, hidden_p), lambda i: (0, 0), pipeline_mode=resident),       # b1
                    pl.BlockSpec((hidden_p, latent_p), lambda i: (0, 0), pipeline_mode=resident),# W2
                    pl.BlockSpec((1, latent_p), lambda i: (0, 0), pipeline_mode=resident),       # b2
                ],
                out_specs=pl.BlockSpec((bb, latent_p), lambda i: (i, 0)),
            ),
            compiler_params=pltpu.CompilerParams(
                dimension_semantics=("parallel",),
                vmem_limit_bytes=vmem_limit,
            ),
            cost_estimate=cost,
        )(x_in, w1p, b1p, w2p, b2p)
    else:
        grid_b = pl.cdiv(B, bb)
        grid_h = hidden_p // bh
        out_p = pl.pallas_call(
            functools.partial(_streaming_kernel, activation=activation),
            out_shape=jax.ShapeDtypeStruct((B, latent_p), out_dtype),
            grid_spec=pltpu.PrefetchScalarGridSpec(
                num_scalar_prefetch=0,
                grid=(grid_b, grid_h),
                in_specs=[
                    pl.BlockSpec((bb, in_f_p), lambda i, k: (i, 0)),                 # x (per batch tile)
                    pl.BlockSpec((in_f_p, bh), lambda i, k: (0, k)),                 # W1 hidden-tile
                    pl.BlockSpec((1, bh), lambda i, k: (0, k)),                      # b1 hidden-tile
                    pl.BlockSpec((bh, latent_p), lambda i, k: (k, 0)),               # W2 hidden-tile
                    pl.BlockSpec((1, latent_p), lambda i, k: (0, 0),
                                 pipeline_mode=resident),                            # b2
                ],
                out_specs=pl.BlockSpec((bb, latent_p), lambda i, k: (i, 0)),
                scratch_shapes=[pltpu.VMEM((bb, latent_p), jnp.float32)],
            ),
            compiler_params=pltpu.CompilerParams(
                dimension_semantics=("parallel", "arbitrary"),
                vmem_limit_bytes=vmem_limit,
            ),
            cost_estimate=cost,
        )(x_in, w1p, b1p, w2p, b2p)

    if latent_dim != latent_p:
        return out_p[:, :latent_dim]
    return out_p


# --------------------------------------------------------------------------------------------
# Init / reference
# --------------------------------------------------------------------------------------------
def init_params(key, in_features, hidden_dim, latent_dim, dtype=jnp.float32):
    """PyTorch-style Linear init: U(-1/sqrt(fan_in), 1/sqrt(fan_in)); weights stored as W.T."""
    k1, k2, k3, k4 = jax.random.split(key, 4)
    bound1 = 1.0 / jnp.sqrt(in_features)
    bound2 = 1.0 / jnp.sqrt(hidden_dim)
    w1_t = jax.random.uniform(k1, (in_features, hidden_dim), dtype, -bound1, bound1)
    b1 = jax.random.uniform(k2, (1, hidden_dim), dtype, -bound1, bound1)
    w2_t = jax.random.uniform(k3, (hidden_dim, latent_dim), dtype, -bound2, bound2)
    b2 = jax.random.uniform(k4, (1, latent_dim), dtype, -bound2, bound2)
    return w1_t, b1, w2_t, b2


def reference(x, w1_t, b1, w2_t, b2, activation="relu"):
    h = _ACTIVATIONS[activation](x @ w1_t + b1.reshape(1, -1))
    return h @ w2_t + b2.reshape(1, -1)


if __name__ == "__main__":
    key = jax.random.PRNGKey(0)
    kx1, kp1, kx2, kp2 = jax.random.split(key, 4)

    # --- Config 1: tiny, unaligned in_features -> resident-weight path (padded x) ----------
    B, in_features, hidden_dim, latent_dim = 8, 32, 64, 16
    x = jax.random.normal(kx1, (B, in_features), jnp.float32)
    w1_t, b1, w2_t, b2 = init_params(kp1, in_features, hidden_dim, latent_dim)
    params = prepare_decoder_params(w1_t, b1, w2_t, b2)

    out = decoder_net(x, *params, latent_dim=latent_dim, activation="relu")
    out = jax.block_until_ready(out)
    ref = reference(x, w1_t, b1, w2_t, b2, "relu")
    assert out.shape == (B, latent_dim), out.shape
    err = float(jnp.max(jnp.abs(out - ref)))
    assert jnp.allclose(out, ref, atol=5e-2, rtol=5e-2), f"resident path mismatch (max err {err})"

    # --- Config 2: lane-aligned in_features, forced weight-streaming (hidden-tiled) path ---
    B2, in2, hid2, lat2 = 16, 128, 256, 16
    x2 = jax.random.normal(kx2, (B2, in2), jnp.float32)
    raw2 = init_params(kp2, in2, hid2, lat2)
    params2 = prepare_decoder_params(*raw2)
    out2 = decoder_net(x2, *params2, latent_dim=lat2, activation="tanh", hidden_block=128)
    out2 = jax.block_until_ready(out2)
    ref2 = reference(x2, *raw2, "tanh")
    assert out2.shape == (B2, lat2), out2.shape
    err2 = float(jnp.max(jnp.abs(out2 - ref2)))
    assert jnp.allclose(out2, ref2, atol=5e-2, rtol=5e-2), f"streaming path mismatch (max err {err2})"

    print("KERNEL_OK")
</pallas_src>

<mosaic_0001>
module attributes {stable_mosaic.version = 11 : i64} {
  func.func @_resident_kernel(%arg0: i32, %arg1: memref<8x128xbf16, #tpu.memory_space<vmem>>, %arg2: memref<128x128xbf16, #tpu.memory_space<vmem>>, %arg3: memref<1x128xf32, #tpu.memory_space<vmem>>, %arg4: memref<128x128xbf16, #tpu.memory_space<vmem>>, %arg5: memref<1x128xf32, #tpu.memory_space<vmem>>, %arg6: memref<8x128xf32, #tpu.memory_space<vmem>>) attributes {dimension_semantics = [#tpu.dimension_semantics<parallel>], iteration_bounds = array<i64: 1>, scalar_prefetch = 0 : i64, scratch_operands = 0 : i64, tpu.core_type = #tpu.core_type<tc>, window_params = [{transform_indices = @transform_0, window_bounds = array<i64: 8, 128>}, {pipeline_mode = #tpu.pipeline_mode<synchronous>, transform_indices = @transform_1, window_bounds = array<i64: 128, 128>}, {pipeline_mode = #tpu.pipeline_mode<synchronous>, transform_indices = @transform_2, window_bounds = array<i64: 1, 128>}, {pipeline_mode = #tpu.pipeline_mode<synchronous>, transform_indices = @transform_3, window_bounds = array<i64: 128, 128>}, {pipeline_mode = #tpu.pipeline_mode<synchronous>, transform_indices = @transform_4, window_bounds = array<i64: 1, 128>}, {transform_indices = @transform_5, window_bounds = array<i64: 8, 128>}]} {
    %c0 = arith.constant 0 : index
    %c0_0 = arith.constant 0 : index
    %0 = vector.load %arg1[%c0, %c0_0] : memref<8x128xbf16, #tpu.memory_space<vmem>>, vector<8x128xbf16>
    %c0_1 = arith.constant 0 : index
    %c0_2 = arith.constant 0 : index
    %1 = vector.load %arg2[%c0_1, %c0_2] : memref<128x128xbf16, #tpu.memory_space<vmem>>, vector<128x128xbf16>
    %cst = arith.constant dense<0.000000e+00> : vector<8x128xf32>
    %2 = tpu.matmul %0, %1, %cst {dimension_numbers = #tpu.dot_dimension_numbers<[1], [0], [0], [1], [0, 0, 1, 1], [], []>} : vector<8x128xbf16>, vector<128x128xbf16>, vector<8x128xf32> -> vector<8x128xf32>
    %c0_3 = arith.constant 0 : index
    %c0_4 = arith.constant 0 : index
    %3 = vector.load %arg3[%c0_3, %c0_4] : memref<1x128xf32, #tpu.memory_space<vmem>>, vector<1x128xf32>
    %4 = vector.broadcast %3 : vector<1x128xf32> to vector<8x128xf32>
    %5 = arith.addf %2, %4 : vector<8x128xf32>
    %cst_5 = arith.constant 0.000000e+00 : f32
    %6 = vector.broadcast %cst_5 : f32 to vector<8x128xf32>
    %7 = arith.maximumf %5, %6 : vector<8x128xf32>
    %8 = arith.truncf %7 : vector<8x128xf32> to vector<8x128xbf16>
    %c0_6 = arith.constant 0 : index
    %c0_7 = arith.constant 0 : index
    %9 = vector.load %arg4[%c0_6, %c0_7] : memref<128x128xbf16, #tpu.memory_space<vmem>>, vector<128x128xbf16>
    %cst_8 = arith.constant dense<0.000000e+00> : vector<8x128xf32>
    %10 = tpu.matmul %8, %9, %cst_8 {dimension_numbers = #tpu.dot_dimension_numbers<[1], [0], [0], [1], [0, 0, 1, 1], [], []>} : vector<8x128xbf16>, vector<128x128xbf16>, vector<8x128xf32> -> vector<8x128xf32>
    %c0_9 = arith.constant 0 : index
    %c0_10 = arith.constant 0 : index
    %11 = vector.load %arg5[%c0_9, %c0_10] : memref<1x128xf32, #tpu.memory_space<vmem>>, vector<1x128xf32>
    %12 = vector.broadcast %11 : vector<1x128xf32> to vector<8x128xf32>
    %13 = arith.addf %10, %12 : vector<8x128xf32>
    %c0_11 = arith.constant 0 : index
    %c0_12 = arith.constant 0 : index
    %14 = vector.load %arg6[%c0_11, %c0_12] : memref<8x128xf32, #tpu.memory_space<vmem>>, vector<8x128xf32>
    tpu.vector_store %arg6[%c0_11, %c0_12], %13 {strides = array<i32>} : memref<8x128xf32, #tpu.memory_space<vmem>>, vector<8x128xf32>,
    return
  }
  func.func @transform_0(%arg0: i32) -> (i32, i32) {
    %c0_i32 = arith.constant 0 : i32
    %c0_i32_0 = arith.constant 0 : i32
    return %arg0, %c0_i32 : i32, i32
  }
  func.func @transform_1(%arg0: i32) -> (i32, i32) {
    %c0_i32 = arith.constant 0 : i32
    %c0_i32_0 = arith.constant 0 : i32
    %c0_i32_1 = arith.constant 0 : i32
    return %c0_i32, %c0_i32_0 : i32, i32
  }
  func.func @transform_2(%arg0: i32) -> (i32, i32) {
    %c0_i32 = arith.constant 0 : i32
    %c0_i32_0 = arith.constant 0 : i32
    %c0_i32_1 = arith.constant 0 : i32
    return %c0_i32, %c0_i32_0 : i32, i32
  }
  func.func @transform_3(%arg0: i32) -> (i32, i32) {
    %c0_i32 = arith.constant 0 : i32
    %c0_i32_0 = arith.constant 0 : i32
    %c0_i32_1 = arith.constant 0 : i32
    return %c0_i32, %c0_i32_0 : i32, i32
  }
  func.func @transform_4(%arg0: i32) -> (i32, i32) {
    %c0_i32 = arith.constant 0 : i32
    %c0_i32_0 = arith.constant 0 : i32
    %c0_i32_1 = arith.constant 0 : i32
    return %c0_i32, %c0_i32_0 : i32, i32
  }
  func.func @transform_5(%arg0: i32) -> (i32, i32) {
    %c0_i32 = arith.constant 0 : i32
    %c0_i32_0 = arith.constant 0 : i32
    return %arg0, %c0_i32 : i32, i32
  }
}

</mosaic_0001>

<llo_original>
// kernel: decoder_net.1
$region0: #{decoder_net.1}
  #allocation0 [shape = 'u32[]', space=smem, size = 0x4, offset = 0x4, fixed_abs, tag = 'smem constant byte address 0x4 - core index']
  #allocation1 [shape = 'u32[144,128]{1,0:T(1,128)}', space=vmem, size = 0x12000, scoped, tag = 'internal scratch']
  %s0 = inlined_call_operand.vmem [shape: bf16[8,128], index: 0, kind: input, shape index: {}]
  %s1 = inlined_call_operand.hbm [shape: bf16[128,128], index: 1, kind: input, shape index: {}]
  %s2 = inlined_call_operand.vmem [shape: f32[1,128], index: 2, kind: input, shape index: {}]
  %s3 = inlined_call_operand.hbm [shape: bf16[128,128], index: 3, kind: input, shape index: {}]
  %s4 = inlined_call_operand.vmem [shape: f32[1,128], index: 4, kind: input, shape index: {}]
  %s5 = inlined_call_operand.hbm [shape: f32[8,128], index: 5, kind: output, shape index: {}]
  %s6 = sld [smem:[#allocation0]]
  $region38: #{decoder_net.1} parent=0
    _
  %s8 = ssub.s32 1, %s6
  %s9 = scalar_select 0, %s8, %s6
  $region1: #{decoder_net.1} parent=0
    #allocation2 [shape = 'u8[32768]{0}', space=vmem, size = 0x8000, scoped, tag = 'input window, operand 1, single buffered']
    #allocation3 [shape = 's32[1]{0}', space=sflag, size = 0x4, scoped, tag = 'scoped memory for decoder_net.1']
    #allocation4 [shape = 's32[1]{0}', space=sflag, size = 0x4, scoped, tag = 'scoped memory for decoder_net.1']
    #allocation5 [shape = 'u8[32768]{0}', space=vmem, size = 0x8000, scoped, tag = 'input window, operand 3, single buffered']
    #allocation6 [shape = 's32[1]{0}', space=sflag, size = 0x4, scoped, tag = 'scoped memory for decoder_net.1']
    #allocation7 [shape = 'u8[4096]{0}', space=vmem, size = 0x1000, scoped, tag = 'output window, operand 0, single buffered']
    %10 = vsyncpa [#allocation3], 0
    %11 = vsyncpa [#allocation6], 0
    %12 = vsyncpa [#allocation4], 0
    // Predicated region
    $region2: #{decoder_net.1} parent=1 // pred_check
      _
    $region3: #{decoder_net.1} parent=1 // pred_check_branch
      %14 = sbr.rel (0) target = $region5
    $region4: #{decoder_net.1} parent=1 // pred_region
      _
    $region5: #{decoder_net.1} parent=1 // pred_fallthru
      _
    // Predicated region
    $region6: #{decoder_net.1} parent=1 // pred_check
      _
    $region7: #{decoder_net.1} parent=1 // pred_check_branch
      %16 = sbr.rel (0) target = $region9
    $region8: #{decoder_net.1} parent=1 // pred_region
      %s18 = ssub.s32 1024, 1024
      %19 = vsyncadd [#allocation3], %s18
      %s20 = sshll.u32 [#allocation2], 4
      %s21 = int_to_ptr.vmem [resolvable:$true] %s20
      %26 = dma.hbm_to_vmem [thread:$0]  %s1, 1024, %s21, [#allocation3], 64, 64, 4
    $region9: #{decoder_net.1} parent=1 // pred_fallthru
      _
    // Predicated region
    $region10: #{decoder_net.1} parent=1 // pred_check
      _
    $region11: #{decoder_net.1} parent=1 // pred_check_branch
      %28 = sbr.rel (0) target = $region13
    $region12: #{decoder_net.1} parent=1 // pred_region
      _
    $region13: #{decoder_net.1} parent=1 // pred_fallthru
      _
    // Predicated region
    $region14: #{decoder_net.1} parent=1 // pred_check
      _
    $region15: #{decoder_net.1} parent=1 // pred_check_branch
      %30 = sbr.rel (0) target = $region17
    $region16: #{decoder_net.1} parent=1 // pred_region
      %s32 = ssub.s32 1024, 1024
      %33 = vsyncadd [#allocation6], %s32
      %s34 = sshll.u32 [#allocation5], 4
      %s35 = int_to_ptr.vmem [resolvable:$true] %s34
      %40 = dma.hbm_to_vmem [thread:$0]  %s3, 1024, %s35, [#allocation6], 64, 64, 4
    $region17: #{decoder_net.1} parent=1 // pred_fallthru
      _
    // Predicated region
    $region18: #{decoder_net.1} parent=1 // pred_check
      _
    $region19: #{decoder_net.1} parent=1 // pred_check_branch
      %42 = sbr.rel (0) target = $region21
    $region20: #{decoder_net.1} parent=1 // pred_region
      _
    $region21: #{decoder_net.1} parent=1 // pred_fallthru
      _
    // Predicated region
    $region22: #{decoder_net.1} parent=1 // pred_check
      _
    $region23: #{decoder_net.1} parent=1 // pred_check_branch
      %44 = sbr.rel (0) target = $region25
    $region24: #{decoder_net.1} parent=1 // pred_region
      %45 = dma.done [#allocation3], 1024
    $region25: #{decoder_net.1} parent=1 // pred_fallthru
      _
    // Predicated region
    $region26: #{decoder_net.1} parent=1 // pred_check
      _
    $region27: #{decoder_net.1} parent=1 // pred_check_branch
      %47 = sbr.rel (0) target = $region29
    $region28: #{decoder_net.1} parent=1 // pred_region
      %48 = dma.done [#allocation6], 1024
    $region29: #{decoder_net.1} parent=1 // pred_fallthru
      _
    %v50 = vld [vmem:[%s0] sm:$0xf]
    %v51 = vld [vmem:[#allocation2] sm:$0xf]
    %v52 = vld [vmem:[#allocation2 + $0x4] sm:$0xf]
    %v53 = vld [vmem:[#allocation2 + $0x8] sm:$0xf]
    %v54 = vld [vmem:[#allocation2 + $0xc] sm:$0xf]
    %v55 = vld [vmem:[#allocation2 + $0x10] sm:$0xf]
    %v56 = vld [vmem:[#allocation2 + $0x14] sm:$0xf]
    %v57 = vld [vmem:[#allocation2 + $0x18] sm:$0xf]
    %v58 = vld [vmem:[#allocation2 + $0x1c] sm:$0xf]
    %v59 = vld [vmem:[#allocation2 + $0x20] sm:$0xf]
    %v60 = vld [vmem:[#allocation2 + $0x24] sm:$0xf]
    %v61 = vld [vmem:[#allocation2 + $0x28] sm:$0xf]
    %v62 = vld [vmem:[#allocation2 + $0x2c] sm:$0xf]
    %v63 = vld [vmem:[#allocation2 + $0x30] sm:$0xf]
    %v64 = vld [vmem:[#allocation2 + $0x34] sm:$0xf]
    %v65 = vld [vmem:[#allocation2 + $0x38] sm:$0xf]
    %v66 = vld [vmem:[#allocation2 + $0x3c] sm:$0xf]
    %v67 = vld [vmem:[%s2] sm:$0x1]
    %v69 = vlaneseq
    %v70 = vshrl.u32 %v69, 7
    %v71 = vsub.s32 0, %v70
    %v72 = vrot.slane %v67, %v71
    %v90 = vunpack.c.l.b16 %v51
    %v91 = vunpack.c.l.b16 %v52
    %v92 = vunpack.c.l.b16 %v53
    %v93 = vunpack.c.l.b16 %v54
    %v94 = vunpack.c.l.b16 %v55
    %v95 = vunpack.c.l.b16 %v56
    %v96 = vunpack.c.l.b16 %v57
    %v97 = vunpack.c.l.b16 %v58
    %v98 = vunpack.c.l.b16 %v59
    %v99 = vunpack.c.l.b16 %v60
    %v100 = vunpack.c.l.b16 %v61
    %v101 = vunpack.c.l.b16 %v62
    %v102 = vunpack.c.l.b16 %v63
    %v103 = vunpack.c.l.b16 %v64
    %v104 = vunpack.c.l.b16 %v65
    %v105 = vunpack.c.l.b16 %v66
    %v106 = vpack.c.b16 %v91, %v90
    %v107 = vpack.c.b16 %v93, %v92
    %v108 = vpack.c.b16 %v95, %v94
    %v109 = vpack.c.b16 %v97, %v96
    %v110 = vpack.c.b16 %v99, %v98
    %v111 = vpack.c.b16 %v101, %v100
    %v112 = vpack.c.b16 %v103, %v102
    %v113 = vpack.c.b16 %v105, %v104
    %122 = vmatprep.subr.bf16.mxu0 0
    %123 = vmatpush1.bf16.msra.mxu0 %v113
    %124 = vmatprep.subr.bf16.mxu0 0
    %125 = vmatpush1.bf16.msra.mxu0 %v112
    %126 = vmatprep.subr.bf16.mxu0 0
    %127 = vmatpush1.bf16.msra.mxu0 %v111
    %128 = vmatprep.subr.bf16.mxu0 0
    %129 = vmatpush1.bf16.msra.mxu0 %v110
    %130 = vmatprep.subr.bf16.mxu0 0
    %131 = vmatpush1.bf16.msra.mxu0 %v109
    %132 = vmatprep.subr.bf16.mxu0 0
    %133 = vmatpush1.bf16.msra.mxu0 %v108
    %134 = vmatprep.subr.bf16.mxu0 0
    %135 = vmatpush1.bf16.msra.mxu0 %v107
    %136 = vmatprep.subr.bf16.mxu0 0
    %137 = vmatpush1.bf16.msra.mxu0 %v106
    %138 = vmatprep.subr.bf16.mxu0 0
    %139 = vmatpush2.bf16.msra.mxu0 0
    %140 = vmatprep.subr.bf16.mxu0 0
    %141 = vmatpush2.bf16.msra.mxu0 0
    %142 = vmatprep.subr.bf16.mxu0 0
    %143 = vmatpush2.bf16.msra.mxu0 0
    %144 = vmatprep.subr.bf16.mxu0 0
    %145 = vmatpush2.bf16.msra.mxu0 0
    %146 = vmatprep.subr.bf16.mxu0 0
    %147 = vmatpush2.bf16.msra.mxu0 0
    %148 = vmatprep.subr.bf16.mxu0 0
    %149 = vmatpush2.bf16.msra.mxu0 0
    %150 = vmatprep.subr.bf16.mxu0 0
    %151 = vmatpush2.bf16.msra.mxu0 0
    %152 = vmatprep.subr.bf16.mxu0 0
    %153 = vmatpush2.bf16.msra.mxu0 0
    %154 = vmatprep.mubr.bf16.mxu0 0
    %155 = vmatmul.mubr.bf16.gmra.mxu0 %v50
    %v156 = vpop.f32.mrf.mxu0
    %v157 = vadd.f32 %v72, %v156
    %v158 = vpop.f32.mrf.mxu0
    %v159 = vpop.f32.mrf.mxu0
    %v160 = vpop.f32.mrf.mxu0
    %161 = vdwg.mxu0
    %v162 = vmax.f32 %v157, 0.0
    %v163 = vpack.c.bf16 %v162, %v162
    %v164 = vld [vmem:[#allocation5] sm:$0xf]
    %v165 = vld [vmem:[#allocation5 + $0x4] sm:$0xf]
    %v166 = vld [vmem:[#allocation5 + $0x8] sm:$0xf]
    %v167 = vld [vmem:[#allocation5 + $0xc] sm:$0xf]
    %v168 = vld [vmem:[#allocation5 + $0x10] sm:$0xf]
    %v169 = vld [vmem:[#allocation5 + $0x14] sm:$0xf]
    %v170 = vld [vmem:[#allocation5 + $0x18] sm:$0xf]
    %v171 = vld [vmem:[#allocation5 + $0x1c] sm:$0xf]
    %v172 = vld [vmem:[#allocation5 + $0x20] sm:$0xf]
    %v173 = vld [vmem:[#allocation5 + $0x24] sm:$0xf]
    %v174 = vld [vmem:[#allocation5 + $0x28] sm:$0xf]
    %v175 = vld [vmem:[#allocation5 + $0x2c] sm:$0xf]
    %v176 = vld [vmem:[#allocation5 + $0x30] sm:$0xf]
    %v177 = vld [vmem:[#allocation5 + $0x34] sm:$0xf]
    %v178 = vld [vmem:[#allocation5 + $0x38] sm:$0xf]
    %v179 = vld [vmem:[#allocation5 + $0x3c] sm:$0xf]
    %v180 = vld [vmem:[%s4] sm:$0x1]
    %v182 = vlaneseq
    %v183 = vshrl.u32 %v182, 7
    %v184 = vsub.s32 0, %v183
    %v185 = vrot.slane %v180, %v184
    %v203 = vunpack.c.l.b16 %v164
    %v204 = vunpack.c.l.b16 %v165
    %v205 = vunpack.c.l.b16 %v166
    %v206 = vunpack.c.l.b16 %v167
    %v207 = vunpack.c.l.b16 %v168
    %v208 = vunpack.c.l.b16 %v169
    %v209 = vunpack.c.l.b16 %v170
    %v210 = vunpack.c.l.b16 %v171
    %v211 = vunpack.c.l.b16 %v172
    %v212 = vunpack.c.l.b16 %v173
    %v213 = vunpack.c.l.b16 %v174
    %v214 = vunpack.c.l.b16 %v175
    %v215 = vunpack.c.l.b16 %v176
    %v216 = vunpack.c.l.b16 %v177
    %v217 = vunpack.c.l.b16 %v178
    %v218 = vunpack.c.l.b16 %v179
    %v219 = vpack.c.b16 %v204, %v203
    %v220 = vpack.c.b16 %v206, %v205
    %v221 = vpack.c.b16 %v208, %v207
    %v222 = vpack.c.b16 %v210, %v209
    %v223 = vpack.c.b16 %v212, %v211
    %v224 = vpack.c.b16 %v214, %v213
    %v225 = vpack.c.b16 %v216, %v215
    %v226 = vpack.c.b16 %v218, %v217
    %235 = vmatprep.subr.bf16.mxu0 0
    %236 = vmatpush1.bf16.msra.mxu0 %v226
    %237 = vmatprep.subr.bf16.mxu0 0
    %238 = vmatpush1.bf16.msra.mxu0 %v225
    %239 = vmatprep.subr.bf16.mxu0 0
    %240 = vmatpush1.bf16.msra.mxu0 %v224
    %241 = vmatprep.subr.bf16.mxu0 0
    %242 = vmatpush1.bf16.msra.mxu0 %v223
    %243 = vmatprep.subr.bf16.mxu0 0
    %244 = vmatpush1.bf16.msra.mxu0 %v222
    %245 = vmatprep.subr.bf16.mxu0 0
    %246 = vmatpush1.bf16.msra.mxu0 %v221
    %247 = vmatprep.subr.bf16.mxu0 0
    %248 = vmatpush1.bf16.msra.mxu0 %v220
    %249 = vmatprep.subr.bf16.mxu0 0
    %250 = vmatpush1.bf16.msra.mxu0 %v219
    %251 = vmatprep.subr.bf16.mxu0 0
    %252 = vmatpush2.bf16.msra.mxu0 0
    %253 = vmatprep.subr.bf16.mxu0 0
    %254 = vmatpush2.bf16.msra.mxu0 0
    %255 = vmatprep.subr.bf16.mxu0 0
    %256 = vmatpush2.bf16.msra.mxu0 0
    %257 = vmatprep.subr.bf16.mxu0 0
    %258 = vmatpush2.bf16.msra.mxu0 0
    %259 = vmatprep.subr.bf16.mxu0 0
    %260 = vmatpush2.bf16.msra.mxu0 0
    %261 = vmatprep.subr.bf16.mxu0 0
    %262 = vmatpush2.bf16.msra.mxu0 0
    %263 = vmatprep.subr.bf16.mxu0 0
    %264 = vmatpush2.bf16.msra.mxu0 0
    %265 = vmatprep.subr.bf16.mxu0 0
    %266 = vmatpush2.bf16.msra.mxu0 0
    %267 = vmatprep.mubr.bf16.mxu0 0
    %268 = vmatmul.mubr.bf16.gmra.mxu0 %v163
    %v269 = vpop.f32.mrf.mxu0
    %v270 = vadd.f32 %v185, %v269
    %v271 = vpop.f32.mrf.mxu0
    %v272 = vpop.f32.mrf.mxu0
    %v273 = vpop.f32.mrf.mxu0
    %274 = vdwg.mxu0
    %275 = vst [vmem:[#allocation7] sm:$0xff] %v270
    // Predicated region
    $region30: #{decoder_net.1} parent=1 // pred_check
      _
    $region31: #{decoder_net.1} parent=1 // pred_check_branch
      %277 = sbr.rel (0) target = $region33
    $region32: #{decoder_net.1} parent=1 // pred_region
      %s279 = ssub.s32 128, 128
      %280 = vsyncadd [#allocation4], %s279
      %s282 = sshll.u32 [#allocation7], 4
      %s283 = int_to_ptr.vmem [resolvable:$true] %s282
      %285 = dma.vmem_to_hbm [thread:$0]  %s283, 128, %s5, [#allocation4]
    $region33: #{decoder_net.1} parent=1 // pred_fallthru
      _
    // Predicated region
    $region34: #{decoder_net.1} parent=1 // pred_check
      _
    $region35: #{decoder_net.1} parent=1 // pred_check_branch
      %287 = sbr.rel (0) target = $region37
    $region36: #{decoder_net.1} parent=1 // pred_region
      %288 = dma.done [#allocation4], 128
    $region37: #{decoder_net.1} parent=1 // pred_fallthru
      _
    %289 = vsyncpa [#allocation3], 1
    %290 = vsyncpa [#allocation6], 1
    %291 = vsyncpa [#allocation4], 1

</llo_original>
